<compile_context>
chip_gen: v7x
topology: tpu7x:2x2x1
jax: 0.10.0
libtpu: 0.0.40
codegen_flags: <defaults>
</compile_context>

<pallas_src>
import jax
import jax.numpy as jnp
from jax.experimental import pallas as pl
from jax.experimental.pallas import tpu as pltpu

LANE = 128                       # TPU lane width; batch lives on the lane axis.
SUBLANE_PAD_ROWS = 16            # 10 feature rows pad to 16 sublanes (f32 and bf16).
VMEM_BUFFER_BUDGET = 32 << 20    # cap for double-buffered x/out tiles (~32 MiB).
VMEM_LIMIT_CAP = 48 << 20        # scoped-VMEM request cap; safe on v5e/v6e/v7x.


def _round_up(n, m):
    return ((n + m - 1) // m) * m


def _round_down(n, m):
    return (n // m) * m


def mlp_kernel(x_ref, w1_ref, b1_ref, w2_ref, b2_ref, w3_ref, b3_ref, o_ref):
    """One batch tile of the MLP in feature-major layout.

    x_ref : [10, TB]   (features on sublanes, batch on lanes -> lane-dense)
    w*    : [out, in]  (PyTorch nn.Linear native layout; kernel computes W @ X)
    b*    : [out, 1]   (f32)
    o_ref : [10, TB]   (f32 or bf16)
    """
    x = x_ref[...]
    # fc1 + ReLU (MXU accumulates in f32; bias/ReLU in f32)
    h1 = jnp.dot(w1_ref[...], x, preferred_element_type=jnp.float32) + b1_ref[...]
    h1 = jnp.maximum(h1, 0.0)
    # fc2 + ReLU
    h2 = jnp.dot(w2_ref[...], h1.astype(w2_ref.dtype),
                 preferred_element_type=jnp.float32) + b2_ref[...]
    h2 = jnp.maximum(h2, 0.0)
    # fc3 (no activation)
    o_ref[...] = (jnp.dot(w3_ref[...], h2.astype(w3_ref.dtype),
                          preferred_element_type=jnp.float32)
                  + b3_ref[...]).astype(o_ref.dtype)


def poker_hand_predictor_forward(x, params, *, use_bf16=True, block_b=65536,
                                 feature_major=False, out_dtype=None):
    """Forward pass of the 10->64->32->10 MLP.

    x: [B, 10] (or [10, B] if feature_major=True). params: PyTorch-layout weights.
    Returns [B, 10] (or [10, B] if feature_major=True) in `out_dtype`
    (default: bf16 when use_bf16 else f32).
    """
    comp_dtype = jnp.bfloat16 if use_bf16 else jnp.float32
    if out_dtype is None:
        out_dtype = comp_dtype

    if feature_major:
        f_in, B = x.shape
        assert f_in == 10
        xt = x.astype(comp_dtype)                   # no transpose pass
    else:
        B, f_in = x.shape
        assert f_in == 10
        xt = x.T.astype(comp_dtype)                 # single transpose+cast copy fusion

    w1, b1 = params["w1"], params["b1"]  # [64, 10], [64]
    w2, b2 = params["w2"], params["b2"]  # [32, 64], [32]
    w3, b3 = params["w3"], params["b3"]  # [10, 32], [10]

    w1c, w2c, w3c = (w.astype(comp_dtype) for w in (w1, w2, w3))
    b1c, b2c, b3c = (b.reshape(-1, 1).astype(jnp.float32) for b in (b1, b2, b3))

    # ---- batch tile selection ----
    in_bytes = jnp.dtype(comp_dtype).itemsize
    out_bytes = jnp.dtype(out_dtype).itemsize
    tb = _round_up(max(min(block_b, B), 1), LANE)
    # (a) VMEM budget: double-buffered, 16-sublane-padded x + out tiles.
    per_col = 2 * SUBLANE_PAD_ROWS * (in_bytes + out_bytes)
    tb = min(tb, max(LANE, _round_down(VMEM_BUFFER_BUDGET // per_col, LANE)))
    # (b) keep >= 2 tiles so v7x megacore can use both TensorCores.
    b_lane = _round_up(B, LANE)
    if b_lane >= 2 * LANE:
        tb = min(tb, max(LANE, _round_down(b_lane // 2, LANE)))
    grid = (pl.cdiv(B, tb),)

    vmem_limit = int(min(VMEM_LIMIT_CAP, max(16 << 20, per_col * tb + (8 << 20))))

    # Parameters: constant block index -> DMA'd once, VMEM-resident for all tiles.
    def param_spec(a):
        return pl.BlockSpec(a.shape, lambda i: (0, 0))

    param_bytes = sum(int(a.size) * a.dtype.itemsize
                      for a in (w1c, b1c, w2c, b2c, w3c, b3c))
    cost = pl.CostEstimate(
        flops=2 * B * (10 * 64 + 64 * 32 + 32 * 10),
        transcendentals=0,
        bytes_accessed=B * 10 * (in_bytes + out_bytes) + param_bytes,
    )

    out_t = pl.pallas_call(
        mlp_kernel,
        out_shape=jax.ShapeDtypeStruct((10, B), out_dtype),
        grid=grid,
        in_specs=[
            pl.BlockSpec((10, tb), lambda i: (0, i)),       # x tile (streamed)
            param_spec(w1c), param_spec(b1c),
            param_spec(w2c), param_spec(b2c),
            param_spec(w3c), param_spec(b3c),
        ],
        out_specs=pl.BlockSpec((10, tb), lambda i: (0, i)),  # ragged tail store is masked
        compiler_params=pltpu.CompilerParams(
            dimension_semantics=("parallel",),                # megacore shard on v7x
            vmem_limit_bytes=vmem_limit),
        cost_estimate=cost,
    )(xt, w1c, b1c, w2c, b2c, w3c, b3c)

    if feature_major:
        return out_t
    return out_t.T


def init_params(key):
    """Deterministic synthetic init, PyTorch nn.Linear layout W:[out,in], b:[out]."""
    def linear_init(key, fan_in, fan_out):
        kw, kb = jax.random.split(key)
        bound = 1.0 / jnp.sqrt(fan_in)
        w = jax.random.uniform(kw, (fan_out, fan_in), jnp.float32, -bound, bound)
        b = jax.random.uniform(kb, (fan_out,), jnp.float32, -bound, bound)
        return w, b

    k1, k2, k3 = jax.random.split(key, 3)
    w1, b1 = linear_init(k1, 10, 64)
    w2, b2 = linear_init(k2, 64, 32)
    w3, b3 = linear_init(k3, 32, 10)
    return {"w1": w1, "b1": b1, "w2": w2, "b2": b2, "w3": w3, "b3": b3}


def reference_forward(x, params):
    h1 = jnp.maximum(x @ params["w1"].T + params["b1"], 0.0)
    h2 = jnp.maximum(h1 @ params["w2"].T + params["b2"], 0.0)
    return h2 @ params["w3"].T + params["b3"]


if __name__ == "__main__":
    key = jax.random.PRNGKey(0)
    kp, kx1, kx2 = jax.random.split(key, 3)
    params = init_params(kp)

    # Small demo batch (single partial 128-lane tile).
    # NOTE: at batch sizes this tiny the pallas_call is pure fixed overhead; in a real
    # serving path dispatch small batches to reference_forward instead.
    batch = 8
    x = jax.random.normal(kx1, (batch, 10), dtype=jnp.float32)
    ref = reference_forward(x, params)

    out_f32 = jax.block_until_ready(
        poker_hand_predictor_forward(x, params, use_bf16=False))
    assert out_f32.shape == (batch, 10) and out_f32.dtype == jnp.float32
    assert jnp.allclose(out_f32, ref, atol=1e-5, rtol=1e-5), "f32 mismatch vs reference"

    out_bf16 = jax.block_until_ready(
        poker_hand_predictor_forward(x, params, use_bf16=True))
    assert out_bf16.shape == (batch, 10) and out_bf16.dtype == jnp.bfloat16
    assert jnp.allclose(out_bf16.astype(jnp.float32), ref, atol=5e-2, rtol=5e-2), \
        "bf16 mismatch vs reference"

    # Multi-tile grid + ragged (masked) final tile: 300 -> 3 tiles of 128, no jnp.pad.
    batch2 = 300
    x2 = jax.random.normal(kx2, (batch2, 10), dtype=jnp.float32)
    ref2 = reference_forward(x2, params)
    out2 = jax.block_until_ready(
        poker_hand_predictor_forward(x2, params, use_bf16=False, block_b=128))
    assert out2.shape == (batch2, 10)
    assert jnp.allclose(out2, ref2, atol=1e-5, rtol=1e-5), "tiled mismatch vs reference"

    # Feature-major I/O path (no wrapper transposes at all).
    out_fm = jax.block_until_ready(
        poker_hand_predictor_forward(x2.T, params, use_bf16=False,
                                     feature_major=True, block_b=128))
    assert out_fm.shape == (10, batch2)
    assert jnp.allclose(out_fm.T, ref2, atol=1e-5, rtol=1e-5), \
        "feature-major mismatch vs reference"

    print("KERNEL_OK")
</pallas_src>

<mosaic_0001>
module attributes {stable_mosaic.version = 11 : i64} {
  func.func @mlp_kernel(%arg0: i32, %arg1: memref<10x128xf32, #tpu.memory_space<vmem>>, %arg2: memref<64x10xf32, #tpu.memory_space<vmem>>, %arg3: memref<64x1xf32, #tpu.memory_space<vmem>>, %arg4: memref<32x64xf32, #tpu.memory_space<vmem>>, %arg5: memref<32x1xf32, #tpu.memory_space<vmem>>, %arg6: memref<10x32xf32, #tpu.memory_space<vmem>>, %arg7: memref<10x1xf32, #tpu.memory_space<vmem>>, %arg8: memref<10x128xf32, #tpu.memory_space<vmem>>) attributes {dimension_semantics = [#tpu.dimension_semantics<parallel>], iteration_bounds = array<i64: 1>, scalar_prefetch = 0 : i64, scratch_operands = 0 : i64, tpu.core_type = #tpu.core_type<tc>, window_params = [{transform_indices = @transform_0, window_bounds = array<i64: 10, 128>}, {pipeline_mode = #tpu.pipeline_mode<synchronous>, transform_indices = @transform_1, window_bounds = array<i64: 64, 10>}, {pipeline_mode = #tpu.pipeline_mode<synchronous>, transform_indices = @transform_2, window_bounds = array<i64: 64, 1>}, {pipeline_mode = #tpu.pipeline_mode<synchronous>, transform_indices = @transform_3, window_bounds = array<i64: 32, 64>}, {pipeline_mode = #tpu.pipeline_mode<synchronous>, transform_indices = @transform_4, window_bounds = array<i64: 32, 1>}, {pipeline_mode = #tpu.pipeline_mode<synchronous>, transform_indices = @transform_5, window_bounds = array<i64: 10, 32>}, {pipeline_mode = #tpu.pipeline_mode<synchronous>, transform_indices = @transform_6, window_bounds = array<i64: 10, 1>}, {transform_indices = @transform_7, window_bounds = array<i64: 10, 128>}]} {
    %c0 = arith.constant 0 : index
    %c0_0 = arith.constant 0 : index
    %0 = vector.load %arg1[%c0, %c0_0] : memref<10x128xf32, #tpu.memory_space<vmem>>, vector<10x128xf32>
    %c0_1 = arith.constant 0 : index
    %c0_2 = arith.constant 0 : index
    %1 = vector.load %arg2[%c0_1, %c0_2] : memref<64x10xf32, #tpu.memory_space<vmem>>, vector<64x10xf32>
    %cst = arith.constant dense<0.000000e+00> : vector<64x128xf32>
    %2 = tpu.matmul %1, %0, %cst {dimension_numbers = #tpu.dot_dimension_numbers<[1], [0], [0], [1], [0, 0, 1, 1], [], []>} : vector<64x10xf32>, vector<10x128xf32>, vector<64x128xf32> -> vector<64x128xf32>
    %c0_3 = arith.constant 0 : index
    %c0_4 = arith.constant 0 : index
    %3 = vector.load %arg3[%c0_3, %c0_4] : memref<64x1xf32, #tpu.memory_space<vmem>>, vector<64x1xf32>
    %4 = vector.broadcast %3 : vector<64x1xf32> to vector<64x128xf32>
    %5 = arith.addf %2, %4 : vector<64x128xf32>
    %cst_5 = arith.constant 0.000000e+00 : f32
    %6 = vector.broadcast %cst_5 : f32 to vector<64x128xf32>
    %7 = arith.maximumf %5, %6 : vector<64x128xf32>
    %c0_6 = arith.constant 0 : index
    %c0_7 = arith.constant 0 : index
    %8 = vector.load %arg4[%c0_6, %c0_7] : memref<32x64xf32, #tpu.memory_space<vmem>>, vector<32x64xf32>
    %cst_8 = arith.constant dense<0.000000e+00> : vector<32x128xf32>
    %9 = tpu.matmul %8, %7, %cst_8 {dimension_numbers = #tpu.dot_dimension_numbers<[1], [0], [0], [1], [0, 0, 1, 1], [], []>} : vector<32x64xf32>, vector<64x128xf32>, vector<32x128xf32> -> vector<32x128xf32>
    %c0_9 = arith.constant 0 : index
    %c0_10 = arith.constant 0 : index
    %10 = vector.load %arg5[%c0_9, %c0_10] : memref<32x1xf32, #tpu.memory_space<vmem>>, vector<32x1xf32>
    %11 = vector.broadcast %10 : vector<32x1xf32> to vector<32x128xf32>
    %12 = arith.addf %9, %11 : vector<32x128xf32>
    %cst_11 = arith.constant 0.000000e+00 : f32
    %13 = vector.broadcast %cst_11 : f32 to vector<32x128xf32>
    %14 = arith.maximumf %12, %13 : vector<32x128xf32>
    %c0_12 = arith.constant 0 : index
    %c0_13 = arith.constant 0 : index
    %15 = vector.load %arg6[%c0_12, %c0_13] : memref<10x32xf32, #tpu.memory_space<vmem>>, vector<10x32xf32>
    %cst_14 = arith.constant dense<0.000000e+00> : vector<10x128xf32>
    %16 = tpu.matmul %15, %14, %cst_14 {dimension_numbers = #tpu.dot_dimension_numbers<[1], [0], [0], [1], [0, 0, 1, 1], [], []>} : vector<10x32xf32>, vector<32x128xf32>, vector<10x128xf32> -> vector<10x128xf32>
    %c0_15 = arith.constant 0 : index
    %c0_16 = arith.constant 0 : index
    %17 = vector.load %arg7[%c0_15, %c0_16] : memref<10x1xf32, #tpu.memory_space<vmem>>, vector<10x1xf32>
    %18 = vector.broadcast %17 : vector<10x1xf32> to vector<10x128xf32>
    %19 = arith.addf %16, %18 : vector<10x128xf32>
    %c0_17 = arith.constant 0 : index
    %c0_18 = arith.constant 0 : index
    %20 = vector.load %arg8[%c0_17, %c0_18] : memref<10x128xf32, #tpu.memory_space<vmem>>, vector<10x128xf32>
    tpu.vector_store %arg8[%c0_17, %c0_18], %19 {strides = array<i32>} : memref<10x128xf32, #tpu.memory_space<vmem>>, vector<10x128xf32>,
    return
  }
  func.func @transform_0(%arg0: i32) -> (i32, i32) {
    %c0_i32 = arith.constant 0 : i32
    %c0_i32_0 = arith.constant 0 : i32
    return %c0_i32, %arg0 : i32, i32
  }
  func.func @transform_1(%arg0: i32) -> (i32, i32) {
    %c0_i32 = arith.constant 0 : i32
    %c0_i32_0 = arith.constant 0 : i32
    %c0_i32_1 = arith.constant 0 : i32
    return %c0_i32, %c0_i32_0 : i32, i32
  }
  func.func @transform_2(%arg0: i32) -> (i32, i32) {
    %c0_i32 = arith.constant 0 : i32
    %c0_i32_0 = arith.constant 0 : i32
    %c0_i32_1 = arith.constant 0 : i32
    return %c0_i32, %c0_i32_0 : i32, i32
  }
  func.func @transform_3(%arg0: i32) -> (i32, i32) {
    %c0_i32 = arith.constant 0 : i32
    %c0_i32_0 = arith.constant 0 : i32
    %c0_i32_1 = arith.constant 0 : i32
    return %c0_i32, %c0_i32_0 : i32, i32
  }
  func.func @transform_4(%arg0: i32) -> (i32, i32) {
    %c0_i32 = arith.constant 0 : i32
    %c0_i32_0 = arith.constant 0 : i32
    %c0_i32_1 = arith.constant 0 : i32
    return %c0_i32, %c0_i32_0 : i32, i32
  }
  func.func @transform_5(%arg0: i32) -> (i32, i32) {
    %c0_i32 = arith.constant 0 : i32
    %c0_i32_0 = arith.constant 0 : i32
    %c0_i32_1 = arith.constant 0 : i32
    return %c0_i32, %c0_i32_0 : i32, i32
  }
  func.func @transform_6(%arg0: i32) -> (i32, i32) {
    %c0_i32 = arith.constant 0 : i32
    %c0_i32_0 = arith.constant 0 : i32
    %c0_i32_1 = arith.constant 0 : i32
    return %c0_i32, %c0_i32_0 : i32, i32
  }
  func.func @transform_7(%arg0: i32) -> (i32, i32) {
    %c0_i32 = arith.constant 0 : i32
    %c0_i32_0 = arith.constant 0 : i32
    return %c0_i32, %arg0 : i32, i32
  }
}

</mosaic_0001>

<llo_original>
// kernel: tpu_custom_call.1
$region0: #{tpu_custom_call.1}
  #allocation0 [shape = 'u32[]', space=smem, size = 0x4, offset = 0x4, fixed_abs, tag = 'smem constant byte address 0x4 - core index']
  #allocation1 [shape = 'u32[144,128]{1,0:T(1,128)}', space=vmem, size = 0x12000, scoped, tag = 'internal scratch']
  %s0 = inlined_call_operand.vmem [shape: f32[10,8], index: 0, kind: input, shape index: {}]
  %s1 = inlined_call_operand.vmem [shape: f32[64,10], index: 1, kind: input, shape index: {}]
  %s2 = inlined_call_operand.vmem [shape: f32[64,1], index: 2, kind: input, shape index: {}]
  %s3 = inlined_call_operand.vmem [shape: f32[32,64], index: 3, kind: input, shape index: {}]
  %s4 = inlined_call_operand.vmem [shape: f32[32,1], index: 4, kind: input, shape index: {}]
  %s5 = inlined_call_operand.vmem [shape: f32[10,32], index: 5, kind: input, shape index: {}]
  %s6 = inlined_call_operand.vmem [shape: f32[10,1], index: 6, kind: input, shape index: {}]
  %s7 = inlined_call_operand.vmem [shape: f32[10,8], index: 7, kind: output, shape index: {}]
  %s8 = sld [smem:[#allocation0]]
  $region38: #{tpu_custom_call.1} parent=0
    _
  %s10 = ssub.s32 1, %s8
  %s11 = scalar_select 0, %s10, %s8
  // Predicated region
  $region2: #{tpu_custom_call.1} parent=0 // pred_check
    _
  $region3: #{tpu_custom_call.1} parent=0 // pred_check_branch
    %13 = sbr.rel (0) target = $region5
  $region4: #{tpu_custom_call.1} parent=0 // pred_region
    _
  $region5: #{tpu_custom_call.1} parent=0 // pred_fallthru
    _
  // Predicated region
  $region6: #{tpu_custom_call.1} parent=0 // pred_check
    _
  $region7: #{tpu_custom_call.1} parent=0 // pred_check_branch
    %15 = sbr.rel (0) target = $region9
  $region8: #{tpu_custom_call.1} parent=0 // pred_region
    _
  $region9: #{tpu_custom_call.1} parent=0 // pred_fallthru
    _
  // Predicated region
  $region10: #{tpu_custom_call.1} parent=0 // pred_check
    _
  $region11: #{tpu_custom_call.1} parent=0 // pred_check_branch
    %17 = sbr.rel (0) target = $region13
  $region12: #{tpu_custom_call.1} parent=0 // pred_region
    _
  $region13: #{tpu_custom_call.1} parent=0 // pred_fallthru
    _
  // Predicated region
  $region14: #{tpu_custom_call.1} parent=0 // pred_check
    _
  $region15: #{tpu_custom_call.1} parent=0 // pred_check_branch
    %19 = sbr.rel (0) target = $region17
  $region16: #{tpu_custom_call.1} parent=0 // pred_region
    _
  $region17: #{tpu_custom_call.1} parent=0 // pred_fallthru
    _
  // Predicated region
  $region18: #{tpu_custom_call.1} parent=0 // pred_check
    _
  $region19: #{tpu_custom_call.1} parent=0 // pred_check_branch
    %21 = sbr.rel (0) target = $region21
  $region20: #{tpu_custom_call.1} parent=0 // pred_region
    _
  $region21: #{tpu_custom_call.1} parent=0 // pred_fallthru
    _
  // Predicated region
  $region22: #{tpu_custom_call.1} parent=0 // pred_check
    _
  $region23: #{tpu_custom_call.1} parent=0 // pred_check_branch
    %23 = sbr.rel (0) target = $region25
  $region24: #{tpu_custom_call.1} parent=0 // pred_region
    _
  $region25: #{tpu_custom_call.1} parent=0 // pred_fallthru
    _
  // Predicated region
  $region26: #{tpu_custom_call.1} parent=0 // pred_check
    _
  $region27: #{tpu_custom_call.1} parent=0 // pred_check_branch
    %25 = sbr.rel (0) target = $region29
  $region28: #{tpu_custom_call.1} parent=0 // pred_region
    _
  $region29: #{tpu_custom_call.1} parent=0 // pred_fallthru
    _
  %v26 = vld [vmem:[%s0] sm:$0xff]
  %v27 = vld [vmem:[%s0 + $0x8] sm:$0x3]
  %v28 = vld [vmem:[%s1] sm:$0xff]
  %v29 = vld [vmem:[%s1 + $0x8] sm:$0xff]
  %v30 = vld [vmem:[%s1 + $0x10] sm:$0xff]
  %v31 = vld [vmem:[%s1 + $0x18] sm:$0xff]
  %v32 = vld [vmem:[%s1 + $0x20] sm:$0xff]
  %v33 = vld [vmem:[%s1 + $0x28] sm:$0xff]
  %v34 = vld [vmem:[%s1 + $0x30] sm:$0xff]
  %v35 = vld [vmem:[%s1 + $0x38] sm:$0xff]
  %v36 = vld [vmem:[%s2] sm:$0xff]
  %v37 = vld [vmem:[%s2 + $0x8] sm:$0xff]
  %v38 = vld [vmem:[%s2 + $0x10] sm:$0xff]
  %v39 = vld [vmem:[%s2 + $0x18] sm:$0xff]
  %v40 = vld [vmem:[%s2 + $0x20] sm:$0xff]
  %v41 = vld [vmem:[%s2 + $0x28] sm:$0xff]
  %v42 = vld [vmem:[%s2 + $0x30] sm:$0xff]
  %v43 = vld [vmem:[%s2 + $0x38] sm:$0xff]
  %45 = vset.pattern.permute.xlu0 0
  %46 = vperm.xlu0 %45, %v36
  %v47 = vpop.permute.xlu0 %46
  %50 = vset.pattern.permute.xlu0 0
  %51 = vperm.xlu0 %50, %v37
  %v52 = vpop.permute.xlu0 %51
  %55 = vset.pattern.permute.xlu0 0
  %56 = vperm.xlu0 %55, %v38
  %v57 = vpop.permute.xlu0 %56
  %60 = vset.pattern.permute.xlu0 0
  %61 = vperm.xlu0 %60, %v39
  %v62 = vpop.permute.xlu0 %61
  %65 = vset.pattern.permute.xlu0 0
  %66 = vperm.xlu0 %65, %v40
  %v67 = vpop.permute.xlu0 %66
  %70 = vset.pattern.permute.xlu0 0
  %71 = vperm.xlu0 %70, %v41
  %v72 = vpop.permute.xlu0 %71
  %75 = vset.pattern.permute.xlu0 0
  %76 = vperm.xlu0 %75, %v42
  %v77 = vpop.permute.xlu0 %76
  %80 = vset.pattern.permute.xlu0 0
  %81 = vperm.xlu0 %80, %v43
  %v82 = vpop.permute.xlu0 %81
  %vm84 = vcmask 80896
  %v86 = vsel %vm84, %v28, 0
  %v89 = vsel %vm84, %v29, 0
  %v92 = vsel %vm84, %v30, 0
  %v95 = vsel %vm84, %v31, 0
  %v98 = vsel %vm84, %v32, 0
  %v101 = vsel %vm84, %v33, 0
  %v104 = vsel %vm84, %v34, 0
  %v107 = vsel %vm84, %v35, 0
  %vm109 = vcmask 1041408
  %v111 = vsel %vm109, %v27, 0
  %113 = vmatprep.subr.mxu0 0.0
  %114 = vmatpush1.msra.mxu0 %v26
  %115 = vmatprep.subr.mxu0 0.0
  %116 = vmatpush1.msra.mxu0 %v111
  %117 = vmatprep.subr.mxu0 0.0
  %118 = vmatpush1.msra.mxu0 0.0
  %119 = vmatprep.subr.mxu0 0.0
  %120 = vmatpush1.msra.mxu0 0.0
  %121 = vmatprep.subr.mxu0 0.0
  %122 = vmatpush1.msra.mxu0 0.0
  %123 = vmatprep.subr.mxu0 0.0
  %124 = vmatpush1.msra.mxu0 0.0
  %125 = vmatprep.subr.mxu0 0.0
  %126 = vmatpush1.msra.mxu0 0.0
  %127 = vmatprep.subr.mxu0 0.0
  %128 = vmatpush1.msra.mxu0 0.0
  %129 = vmatprep.subr.mxu0 0.0
  %130 = vmatpush1.msra.mxu0 0.0
  %131 = vmatprep.subr.mxu0 0.0
  %132 = vmatpush1.msra.mxu0 0.0
  %133 = vmatprep.subr.mxu0 0.0
  %134 = vmatpush1.msra.mxu0 0.0
  %135 = vmatprep.subr.mxu0 0.0
  %136 = vmatpush1.msra.mxu0 0.0
  %137 = vmatprep.subr.mxu0 0.0
  %138 = vmatpush1.msra.mxu0 0.0
  %139 = vmatprep.subr.mxu0 0.0
  %140 = vmatpush1.msra.mxu0 0.0
  %141 = vmatprep.subr.mxu0 0.0
  %142 = vmatpush1.msra.mxu0 0.0
  %143 = vmatprep.subr.mxu0 0.0
  %144 = vmatpush1.msra.mxu0 0.0
  %145 = vmatprep.subr.mxu0 0.0
  %146 = vmatpush1.msra.mxu0 0.0
  %147 = vmatprep.subr.mxu0 0.0
  %148 = vmatpush1.msra.mxu0 0.0
  %149 = vmatprep.subr.mxu0 0.0
  %150 = vmatpush1.msra.mxu0 0.0
  %151 = vmatprep.subr.mxu0 0.0
  %152 = vmatpush1.msra.mxu0 0.0
  %153 = vmatprep.subr.mxu0 0.0
  %154 = vmatpush1.msra.mxu0 0.0
  %155 = vmatprep.subr.mxu0 0.0
  %156 = vmatpush1.msra.mxu0 0.0
  %157 = vmatprep.subr.mxu0 0.0
  %158 = vmatpush1.msra.mxu0 0.0
  %159 = vmatprep.subr.mxu0 0.0
  %160 = vmatpush1.msra.mxu0 0.0
  %161 = vmatprep.subr.mxu0 0.0
  %162 = vmatpush1.msra.mxu0 0.0
  %163 = vmatprep.subr.mxu0 0.0
  %164 = vmatpush1.msra.mxu0 0.0
  %165 = vmatprep.subr.mxu0 0.0
  %166 = vmatpush1.msra.mxu0 0.0
  %167 = vmatprep.subr.mxu0 0.0
  %168 = vmatpush1.msra.mxu0 0.0
  %169 = vmatprep.subr.mxu0 0.0
  %170 = vmatpush1.msra.mxu0 0.0
  %171 = vmatprep.subr.mxu0 0.0
  %172 = vmatpush1.msra.mxu0 0.0
  %173 = vmatprep.subr.mxu0 0.0
  %174 = vmatpush1.msra.mxu0 0.0
  %175 = vmatprep.subr.mxu0 0.0
  %176 = vmatpush1.msra.mxu0 0.0
  %177 = vmatprep.mubr.f32.mxu0 0.0
  %178 = vmatmul.mubr.f32.gmra.mrb[0].mxu0 %v86
  %v179 = vpop.f32.mrb[0].mxu0
  %v180 = vadd.f32 %v47, %v179
  %v181 = vpop.f32.mrb[0].mxu0
  %182 = vmatprep.mubr.f32.mxu0 0.0
  %183 = vmatmul.mubr.f32.gmra.mrb[0].mxu0 %v89
  %v184 = vpop.f32.mrb[0].mxu0
  %v185 = vadd.f32 %v52, %v184
  %v186 = vpop.f32.mrb[0].mxu0
  %187 = vmatprep.mubr.f32.mxu0 0.0
  %188 = vmatmul.mubr.f32.gmra.mrb[0].mxu0 %v92
  %v189 = vpop.f32.mrb[0].mxu0
  %v190 = vadd.f32 %v57, %v189
  %v191 = vpop.f32.mrb[0].mxu0
  %192 = vmatprep.mubr.f32.mxu0 0.0
  %193 = vmatmul.mubr.f32.gmra.mrb[0].mxu0 %v95
  %v194 = vpop.f32.mrb[0].mxu0
  %v195 = vadd.f32 %v62, %v194
  %v196 = vpop.f32.mrb[0].mxu0
  %197 = vmatprep.mubr.f32.mxu0 0.0
  %198 = vmatmul.mubr.f32.gmra.mrb[0].mxu0 %v98
  %v199 = vpop.f32.mrb[0].mxu0
  %v200 = vadd.f32 %v67, %v199
  %v201 = vpop.f32.mrb[0].mxu0
  %202 = vmatprep.mubr.f32.mxu0 0.0
  %203 = vmatmul.mubr.f32.gmra.mrb[0].mxu0 %v101
  %v204 = vpop.f32.mrb[0].mxu0
  %v205 = vadd.f32 %v72, %v204
  %v206 = vpop.f32.mrb[0].mxu0
  %207 = vmatprep.mubr.f32.mxu0 0.0
  %208 = vmatmul.mubr.f32.gmra.mrb[0].mxu0 %v104
  %v209 = vpop.f32.mrb[0].mxu0
  %v210 = vadd.f32 %v77, %v209
  %v211 = vpop.f32.mrb[0].mxu0
  %212 = vmatprep.mubr.f32.mxu0 0.0
  %213 = vmatmul.mubr.f32.gmra.mrb[0].mxu0 %v107
  %v214 = vpop.f32.mrb[0].mxu0
  %v215 = vadd.f32 %v82, %v214
  %v216 = vpop.f32.mrb[0].mxu0
  %217 = vdwg.mxu0
  %v218 = vmax.f32 %v180, 0.0
  %v219 = vmax.f32 %v185, 0.0
  %v220 = vmax.f32 %v190, 0.0
  %v221 = vmax.f32 %v195, 0.0
  %v222 = vmax.f32 %v200, 0.0
  %v223 = vmax.f32 %v205, 0.0
  %v224 = vmax.f32 %v210, 0.0
  %v225 = vmax.f32 %v215, 0.0
  %v226 = vld [vmem:[%s3] sm:$0xff]
  %v227 = vld [vmem:[%s3 + $0x8] sm:$0xff]
  %v228 = vld [vmem:[%s3 + $0x10] sm:$0xff]
  %v229 = vld [vmem:[%s3 + $0x18] sm:$0xff]
  %v230 = vld [vmem:[%s4] sm:$0xff]
  %v231 = vld [vmem:[%s4 + $0x8] sm:$0xff]
  %v232 = vld [vmem:[%s4 + $0x10] sm:$0xff]
  %v233 = vld [vmem:[%s4 + $0x18] sm:$0xff]
  %235 = vset.pattern.permute.xlu0 0
  %236 = vperm.xlu0 %235, %v230
  %v237 = vpop.permute.xlu0 %236
  %240 = vset.pattern.permute.xlu0 0
  %241 = vperm.xlu0 %240, %v231
  %v242 = vpop.permute.xlu0 %241
  %245 = vset.pattern.permute.xlu0 0
  %246 = vperm.xlu0 %245, %v232
  %v247 = vpop.permute.xlu0 %246
  %250 = vset.pattern.permute.xlu0 0
  %251 = vperm.xlu0 %250, %v233
  %v252 = vpop.permute.xlu0 %251
  %vm254 = vcmask 523264
  %v256 = vsel %vm254, %v226, 0
  %v259 = vsel %vm254, %v227, 0
  %v262 = vsel %vm254, %v228, 0
  %v265 = vsel %vm254, %v229, 0
  %267 = vmatprep.subr.mxu0 0.0
  %268 = vmatpush1.msra.mxu0 %v218
  %269 = vmatprep.subr.mxu0 0.0
  %270 = vmatpush1.msra.mxu0 %v219
  %271 = vmatprep.subr.mxu0 0.0
  %272 = vmatpush1.msra.mxu0 %v220
  %273 = vmatprep.subr.mxu0 0.0
  %274 = vmatpush1.msra.mxu0 %v221
  %275 = vmatprep.subr.mxu0 0.0
  %276 = vmatpush1.msra.mxu0 %v222
  %277 = vmatprep.subr.mxu0 0.0
  %278 = vmatpush1.msra.mxu0 %v223
  %279 = vmatprep.subr.mxu0 0.0
  %280 = vmatpush1.msra.mxu0 %v224
  %281 = vmatprep.subr.mxu0 0.0
  %282 = vmatpush1.msra.mxu0 %v225
  %283 = vmatprep.subr.mxu0 0.0
  %284 = vmatpush1.msra.mxu0 0.0
  %285 = vmatprep.subr.mxu0 0.0
  %286 = vmatpush1.msra.mxu0 0.0
  %287 = vmatprep.subr.mxu0 0.0
  %288 = vmatpush1.msra.mxu0 0.0
  %289 = vmatprep.subr.mxu0 0.0
  %290 = vmatpush1.msra.mxu0 0.0
  %291 = vmatprep.subr.mxu0 0.0
  %292 = vmatpush1.msra.mxu0 0.0
  %293 = vmatprep.subr.mxu0 0.0
  %294 = vmatpush1.msra.mxu0 0.0
  %295 = vmatprep.subr.mxu0 0.0
  %296 = vmatpush1.msra.mxu0 0.0
  %297 = vmatprep.subr.mxu0 0.0
  %298 = vmatpush1.msra.mxu0 0.0
  %299 = vmatprep.subr.mxu0 0.0
  %300 = vmatpush1.msra.mxu0 0.0
  %301 = vmatprep.subr.mxu0 0.0
  %302 = vmatpush1.msra.mxu0 0.0
  %303 = vmatprep.subr.mxu0 0.0
  %304 = vmatpush1.msra.mxu0 0.0
  %305 = vmatprep.subr.mxu0 0.0
  %306 = vmatpush1.msra.mxu0 0.0
  %307 = vmatprep.subr.mxu0 0.0
  %308 = vmatpush1.msra.mxu0 0.0
  %309 = vmatprep.subr.mxu0 0.0
  %310 = vmatpush1.msra.mxu0 0.0
  %311 = vmatprep.subr.mxu0 0.0
  %312 = vmatpush1.msra.mxu0 0.0
  %313 = vmatprep.subr.mxu0 0.0
  %314 = vmatpush1.msra.mxu0 0.0
  %315 = vmatprep.subr.mxu0 0.0
  %316 = vmatpush1.msra.mxu0 0.0
  %317 = vmatprep.subr.mxu0 0.0
  %318 = vmatpush1.msra.mxu0 0.0
  %319 = vmatprep.subr.mxu0 0.0
  %320 = vmatpush1.msra.mxu0 0.0
  %321 = vmatprep.subr.mxu0 0.0
  %322 = vmatpush1.msra.mxu0 0.0
  %323 = vmatprep.subr.mxu0 0.0
  %324 = vmatpush1.msra.mxu0 0.0
  %325 = vmatprep.subr.mxu0 0.0
  %326 = vmatpush1.msra.mxu0 0.0
  %327 = vmatprep.subr.mxu0 0.0
  %328 = vmatpush1.msra.mxu0 0.0
  %329 = vmatprep.subr.mxu0 0.0
  %330 = vmatpush1.msra.mxu0 0.0
  %331 = vmatprep.mubr.f32.mxu0 0.0
  %332 = vmatmul.mubr.f32.gmra.mrb[0].mxu0 %v256
  %v333 = vpop.f32.mrb[0].mxu0
  %v334 = vadd.f32 %v237, %v333
  %v335 = vpop.f32.mrb[0].mxu0
  %336 = vmatprep.mubr.f32.mxu0 0.0
  %337 = vmatmul.mubr.f32.gmra.mrb[0].mxu0 %v259
  %v338 = vpop.f32.mrb[0].mxu0
  %v339 = vadd.f32 %v242, %v338
  %v340 = vpop.f32.mrb[0].mxu0
  %341 = vmatprep.mubr.f32.mxu0 0.0
  %342 = vmatmul.mubr.f32.gmra.mrb[0].mxu0 %v262
  %v343 = vpop.f32.mrb[0].mxu0
  %v344 = vadd.f32 %v247, %v343
  %v345 = vpop.f32.mrb[0].mxu0
  %346 = vmatprep.mubr.f32.mxu0 0.0
  %347 = vmatmul.mubr.f32.gmra.mrb[0].mxu0 %v265
  %v348 = vpop.f32.mrb[0].mxu0
  %v349 = vadd.f32 %v252, %v348
  %v350 = vpop.f32.mrb[0].mxu0
  %351 = vdwg.mxu0
  %v352 = vmax.f32 %v334, 0.0
  %v353 = vmax.f32 %v339, 0.0
  %v354 = vmax.f32 %v344, 0.0
  %v355 = vmax.f32 %v349, 0.0
  %v356 = vld [vmem:[%s5] sm:$0xff]
  %v357 = vld [vmem:[%s5 + $0x8] sm:$0x3]
  %v358 = vld [vmem:[%s6] sm:$0xff]
  %v359 = vld [vmem:[%s6 + $0x8] sm:$0x3]
  %361 = vset.pattern.permute.xlu0 0
  %362 = vperm.xlu0 %361, %v358
  %v363 = vpop.permute.xlu0 %362
  %366 = vset.pattern.permute.xlu0 0
  %367 = vperm.xlu0 %366, %v359
  %v368 = vpop.permute.xlu0 %367
  %vm370 = vcmask 261120
  %v372 = vsel %vm370, %v356, 0
  %v375 = vsel %vm370, %v357, 0
  %377 = vmatprep.subr.mxu0 0.0
  %378 = vmatpush1.msra.mxu0 %v352
  %379 = vmatprep.subr.mxu0 0.0
  %380 = vmatpush1.msra.mxu0 %v353
  %381 = vmatprep.subr.mxu0 0.0
  %382 = vmatpush1.msra.mxu0 %v354
  %383 = vmatprep.subr.mxu0 0.0
  %384 = vmatpush1.msra.mxu0 %v355
  %385 = vmatprep.subr.mxu0 0.0
  %386 = vmatpush1.msra.mxu0 0.0
  %387 = vmatprep.subr.mxu0 0.0
  %388 = vmatpush1.msra.mxu0 0.0
  %389 = vmatprep.subr.mxu0 0.0
  %390 = vmatpush1.msra.mxu0 0.0
  %391 = vmatprep.subr.mxu0 0.0
  %392 = vmatpush1.msra.mxu0 0.0
  %393 = vmatprep.subr.mxu0 0.0
  %394 = vmatpush1.msra.mxu0 0.0
  %395 = vmatprep.subr.mxu0 0.0
  %396 = vmatpush1.msra.mxu0 0.0
  %397 = vmatprep.subr.mxu0 0.0
  %398 = vmatpush1.msra.mxu0 0.0
  %399 = vmatprep.subr.mxu0 0.0
  %400 = vmatpush1.msra.mxu0 0.0
  %401 = vmatprep.subr.mxu0 0.0
  %402 = vmatpush1.msra.mxu0 0.0
  %403 = vmatprep.subr.mxu0 0.0
  %404 = vmatpush1.msra.mxu0 0.0
  %405 = vmatprep.subr.mxu0 0.0
  %406 = vmatpush1.msra.mxu0 0.0
  %407 = vmatprep.subr.mxu0 0.0
  %408 = vmatpush1.msra.mxu0 0.0
  %409 = vmatprep.subr.mxu0 0.0
  %410 = vmatpush1.msra.mxu0 0.0
  %411 = vmatprep.subr.mxu0 0.0
  %412 = vmatpush1.msra.mxu0 0.0
  %413 = vmatprep.subr.mxu0 0.0
  %414 = vmatpush1.msra.mxu0 0.0
  %415 = vmatprep.subr.mxu0 0.0
  %416 = vmatpush1.msra.mxu0 0.0
  %417 = vmatprep.subr.mxu0 0.0
  %418 = vmatpush1.msra.mxu0 0.0
  %419 = vmatprep.subr.mxu0 0.0
  %420 = vmatpush1.msra.mxu0 0.0
  %421 = vmatprep.subr.mxu0 0.0
  %422 = vmatpush1.msra.mxu0 0.0
  %423 = vmatprep.subr.mxu0 0.0
  %424 = vmatpush1.msra.mxu0 0.0
  %425 = vmatprep.subr.mxu0 0.0
  %426 = vmatpush1.msra.mxu0 0.0
  %427 = vmatprep.subr.mxu0 0.0
  %428 = vmatpush1.msra.mxu0 0.0
  %429 = vmatprep.subr.mxu0 0.0
  %430 = vmatpush1.msra.mxu0 0.0
  %431 = vmatprep.subr.mxu0 0.0
  %432 = vmatpush1.msra.mxu0 0.0
  %433 = vmatprep.subr.mxu0 0.0
  %434 = vmatpush1.msra.mxu0 0.0
  %435 = vmatprep.subr.mxu0 0.0
  %436 = vmatpush1.msra.mxu0 0.0
  %437 = vmatprep.subr.mxu0 0.0
  %438 = vmatpush1.msra.mxu0 0.0
  %439 = vmatprep.subr.mxu0 0.0
  %440 = vmatpush1.msra.mxu0 0.0
  %441 = vmatprep.mubr.f32.mxu0 0.0
  %442 = vmatmul.mubr.f32.gmra.mrb[0].mxu0 %v372
  %v443 = vpop.f32.mrb[0].mxu0
  %v444 = vadd.f32 %v363, %v443
  %v445 = vpop.f32.mrb[0].mxu0
  %446 = vmatprep.mubr.f32.mxu0 0.0
  %447 = vmatmul.mubr.f32.gmra.mrb[0].mxu0 %v375
  %v448 = vpop.f32.mrb[0].mxu0
  %v449 = vadd.f32 %v368, %v448
  %v450 = vpop.f32.mrb[0].mxu0
  %451 = vdwg.mxu0
  %452 = vst [vmem:[%s7] sm:$0xff] %v444
  %453 = vst [vmem:[%s7 + $0x8] sm:$0x3] %v449
  // Predicated region
  $region30: #{tpu_custom_call.1} parent=0 // pred_check
    _
  $region31: #{tpu_custom_call.1} parent=0 // pred_check_branch
    %455 = sbr.rel (0) target = $region33
  $region32: #{tpu_custom_call.1} parent=0 // pred_region
    _
  $region33: #{tpu_custom_call.1} parent=0 // pred_fallthru
    _
  // Predicated region
  $region34: #{tpu_custom_call.1} parent=0 // pred_check
    _
  $region35: #{tpu_custom_call.1} parent=0 // pred_check_branch
    %457 = sbr.rel (0) target = $region37
  $region36: #{tpu_custom_call.1} parent=0 // pred_region
    _
  $region37: #{tpu_custom_call.1} parent=0 // pred_fallthru
    _

</llo_original>
